<compile_context>
chip_gen: v6e
topology: v6e:2x2x1
jax: 0.10.0
libtpu: 0.0.40
codegen_flags: <defaults>
</compile_context>

<pallas_src>
import functools

import numpy as np
import jax
import jax.numpy as jnp
from jax import lax
from jax.experimental import pallas as pl
from jax.experimental.pallas import tpu as pltpu


def _round_up(x, m):
    return ((x + m - 1) // m) * m


def _cdiv(a, b):
    return -(-a // b)


def _guided_loss_kernel(ilens_ref, olens_ref, att_ref, gmask_ref, psum_ref,
                        *, sigma, chunksize, tile_i):
    b = pl.program_id(0)
    it = pl.program_id(1)
    O = gmask_ref.shape[2]                      # lane-padded block width

    il_i = ilens_ref[b]
    ol_i = olens_ref[b]
    # Guard against zero lengths: avoid inf/NaN that would poison the sum.
    il_f = jnp.maximum(il_i, 1).astype(jnp.float32)
    ol_f = jnp.maximum(ol_i, 1).astype(jnp.float32)

    row_off = it * tile_i
    row_ids = lax.broadcasted_iota(jnp.int32, (tile_i, 1), 0) + row_off  # (TI,1)
    col_ids = lax.broadcasted_iota(jnp.int32, (1, O), 1)                 # (1,O)

    # Reduced-shape divides: O + TI divides instead of 2*TI*O; per-element
    # values are bitwise identical to the elementwise o/ilen, i/olen of the
    # reference (same IEEE division of the same operands).
    col_scaled = col_ids.astype(jnp.float32) / il_f     # o / ilen  (1,O)
    row_scaled = row_ids.astype(jnp.float32) / ol_f     # i / olen  (TI,1)
    d = col_scaled - row_scaled                          # (TI,O) via broadcast

    neg_inv_two_sigma_sq = jnp.float32(-1.0 / (2.0 * sigma * sigma))
    g = 1.0 - jnp.exp(d * d * neg_inv_two_sigma_sq)      # (TI,O)

    col_valid = col_ids < ol_i          # (1,O)
    row_valid = row_ids < il_i          # (TI,1)
    valid = row_valid & col_valid       # (TI,O)

    if chunksize > 0:
        # Closed-form per-row first-argmin over valid columns: g is monotone
        # in |o/ilen - i/olen|, so the argmin is the integer o nearest to
        # t = i*ilen/olen (ties toward the smaller o), clamped to [0, olen-1].
        t = row_scaled * il_f                          # (TI,1)
        o_star_f = jnp.clip(jnp.ceil(t - 0.5), 0.0, ol_f - 1.0)   # round-half-down
        o_star = o_star_f.astype(jnp.int32)            # (TI,1)
        # Same float ops as the elementwise path -> bitwise-identical fill value.
        d_min = o_star_f / il_f - row_scaled
        min_val = 1.0 - jnp.exp(d_min * d_min * neg_inv_two_sigma_sq)   # (TI,1)
        in_chunk = ((col_ids >= o_star - chunksize) &
                    (col_ids < o_star + chunksize))     # (TI,O); invalid cols
        g = jnp.where(in_chunk, min_val, g)             # zeroed below anyway

    # Zero outside the (ilen, olen) region (matches torch.zeros init).
    g = jnp.where(valid, g, jnp.float32(0.0))
    gmask_ref[0] = g

    # Masked-loss numerator for this (batch, i-tile) block.  att boundary
    # blocks contain undefined data outside (I, O), so mask before multiply.
    att = jnp.where(valid, att_ref[0].astype(jnp.float32), jnp.float32(0.0))
    prod = g * att
    row_sums = jnp.sum(prod, axis=1, keepdims=True)                     # (TI,1)
    psum_ref[...] = jnp.sum(row_sums, axis=0, keepdims=True).reshape(1, 1, 1, 1)


def guided_attention_loss(att_ws, ilens, olens, *, sigma=0.4, alpha=1.0,
                          chunksize=6):
    """Returns (alpha * loss, guided_attn_masks), matching the PyTorch forward."""
    B, I, O = att_ws.shape
    ilens = ilens.astype(jnp.int32)
    olens = olens.astype(jnp.int32)

    # Lane-dense block width (no HBM padding of att/gmask themselves).
    O_pad = _round_up(O, 128)

    # I-tile: ~1 MiB f32 plane budget (roofline sweet spot, safe on v5e/v7x
    # VMEM once double-buffering + temporaries are counted), row cap 512, then
    # re-fit TI to I so at most 7 rows are wasted.  Force >= 2 grid steps when
    # possible so both v7x TensorCores get work.
    plane_budget = 1 * 1024 * 1024
    ti_max = max(8, min(512, (plane_budget // (O_pad * 4)) // 8 * 8))
    n_it = _cdiv(I, ti_max)
    if B * n_it < 2 and I > 8:
        n_it = 2
    TI = _round_up(_cdiv(I, n_it), 8)
    n_it = _cdiv(I, TI)

    kernel = functools.partial(_guided_loss_kernel, sigma=sigma,
                               chunksize=chunksize, tile_i=TI)

    itemsize = jnp.dtype(att_ws.dtype).itemsize
    cost = pl.CostEstimate(
        flops=12 * B * I * O_pad,
        transcendentals=B * I * O_pad,
        bytes_accessed=B * I * O * (itemsize + 4),
    )

    gmask, psums = pl.pallas_call(
        kernel,
        out_shape=(
            jax.ShapeDtypeStruct((B, I, O), jnp.float32),      # guide masks
            jax.ShapeDtypeStruct((B, n_it, 1, 1), jnp.float32),  # partial sums
        ),
        grid_spec=pltpu.PrefetchScalarGridSpec(
            num_scalar_prefetch=2,                 # ilens, olens land in SMEM
            grid=(B, n_it),
            in_specs=[
                pl.BlockSpec((1, TI, O_pad), lambda b, it, il, ol: (b, it, 0)),
            ],
            out_specs=(
                pl.BlockSpec((1, TI, O_pad), lambda b, it, il, ol: (b, it, 0)),
                pl.BlockSpec((1, 1, 1, 1), lambda b, it, il, ol: (b, it, 0, 0)),
            ),
        ),
        compiler_params=pltpu.CompilerParams(
            dimension_semantics=("parallel", "parallel"),
            vmem_limit_bytes=32 * 1024 * 1024,
        ),
        cost_estimate=cost,
    )(ilens, olens, att_ws)

    # mean over masked_select == numerator / (sum_b ilen_b * olen_b)
    count = jnp.sum((ilens * olens).astype(jnp.float32))
    loss = jnp.float32(alpha) * jnp.sum(psums) / count
    return loss, gmask


def _reference(att_ws, ilens, olens, sigma, alpha, chunksize):
    """Pure numpy re-implementation mirroring the PyTorch module."""
    B = att_ws.shape[0]
    max_il = int(ilens.max())
    max_ol = int(olens.max())
    g = np.zeros((B, max_il, max_ol), np.float32)
    mask = np.zeros((B, max_il, max_ol), bool)
    for bi in range(B):
        il, ol = int(ilens[bi]), int(olens[bi])
        gx, gy = np.meshgrid(np.arange(il, dtype=np.float32),
                             np.arange(ol, dtype=np.float32), indexing="ij")
        gm = (1.0 - np.exp(-((gy / il - gx / ol) ** 2)
                           / np.float32(2.0 * sigma * sigma))).astype(np.float32)
        if chunksize > 0:
            for r in range(il):
                mi = int(np.argmin(gm[r]))
                mv = gm[r].min()
                gm[r, max(mi - chunksize, 0):min(mi + chunksize, ol)] = mv
        g[bi, :il, :ol] = gm
        mask[bi, :il, :ol] = True
    losses = g * att_ws
    loss = losses[mask].mean()
    return np.float32(alpha) * loss, g


def _run_case(key, ilens_np, olens_np, sigma=0.4, alpha=1.0, chunksize=6):
    ilens = jnp.asarray(ilens_np, dtype=jnp.int32)
    olens = jnp.asarray(olens_np, dtype=jnp.int32)
    B = ilens.shape[0]
    I = int(np.max(ilens_np))
    O = int(np.max(olens_np))
    att_ws = jax.random.uniform(key, (B, I, O), dtype=jnp.float32)

    loss, gmask = guided_attention_loss(att_ws, ilens, olens, sigma=sigma,
                                        alpha=alpha, chunksize=chunksize)
    jax.block_until_ready((loss, gmask))

    ref_loss, ref_g = _reference(np.asarray(att_ws), np.asarray(ilens_np),
                                 np.asarray(olens_np), sigma, alpha, chunksize)
    np.testing.assert_allclose(np.asarray(gmask), ref_g, atol=2e-4)
    np.testing.assert_allclose(float(loss), float(ref_loss),
                               rtol=2e-4, atol=1e-6)


if __name__ == "__main__":
    key = jax.random.PRNGKey(0)
    k1, k2 = jax.random.split(key)

    # Case 1: small, exercises per-batch ragged lengths (max_ilen=12, max_olen=11).
    _run_case(k1, np.array([12, 7]), np.array([9, 11]))

    # Case 2: mid-size, exercises boundary blocks on both axes (I=130, O=231,
    # neither a multiple of the (8,128)-aligned block) with no host-side pad.
    _run_case(k2, np.array([130, 77]), np.array([195, 231]))

    print("KERNEL_OK")
</pallas_src>

<mosaic_0001>
module attributes {stable_mosaic.version = 11 : i64} {
  func.func @_guided_loss_kernel(%arg0: i32, %arg1: i32, %arg2: memref<2xi32, #tpu.memory_space<smem>>, %arg3: memref<2xi32, #tpu.memory_space<smem>>, %arg4: memref<1x16x128xf32, #tpu.memory_space<vmem>>, %arg5: memref<1x16x128xf32, #tpu.memory_space<vmem>>, %arg6: memref<1x1x1x1xf32, #tpu.memory_space<vmem>>) attributes {dimension_semantics = [#tpu.dimension_semantics<parallel>, #tpu.dimension_semantics<parallel>], iteration_bounds = array<i64: 2, 1>, scalar_prefetch = 2 : i64, scratch_operands = 0 : i64, tpu.core_type = #tpu.core_type<tc>, window_params = [{transform_indices = @transform_0, window_bounds = array<i64: 1, 16, 128>}, {transform_indices = @transform_1, window_bounds = array<i64: 1, 16, 128>}, {transform_indices = @transform_2, window_bounds = array<i64: 1, 1, 1, 1>}]} {
    %0 = arith.index_cast %arg0 : i32 to index
    %1 = memref.load %arg2[%0] : memref<2xi32, #tpu.memory_space<smem>>
    %2 = arith.index_cast %arg0 : i32 to index
    %3 = memref.load %arg3[%2] : memref<2xi32, #tpu.memory_space<smem>>
    %c1_i32 = arith.constant 1 : i32
    %4 = arith.maxsi %1, %c1_i32 : i32
    %5 = arith.sitofp %4 : i32 to f32
    %c1_i32_0 = arith.constant 1 : i32
    %6 = arith.maxsi %3, %c1_i32_0 : i32
    %7 = arith.sitofp %6 : i32 to f32
    %c16_i32 = arith.constant 16 : i32
    %8 = arith.muli %arg1, %c16_i32 : i32
    %9 = tpu.iota {dimensions = array<i32: 0>} : vector<16x1xi32>
    %10 = vector.broadcast %8 : i32 to vector<16x1xi32>
    %11 = arith.addi %9, %10 : vector<16x1xi32>
    %12 = tpu.iota {dimensions = array<i32: 1>} : vector<1x128xi32>
    %13 = arith.sitofp %12 : vector<1x128xi32> to vector<1x128xf32>
    %14 = vector.broadcast %5 : f32 to vector<1x128xf32>
    %15 = arith.divf %13, %14 : vector<1x128xf32>
    %16 = arith.sitofp %11 : vector<16x1xi32> to vector<16x1xf32>
    %17 = vector.broadcast %7 : f32 to vector<16x1xf32>
    %18 = arith.divf %16, %17 : vector<16x1xf32>
    %19 = vector.broadcast %15 : vector<1x128xf32> to vector<16x128xf32>
    %20 = vector.broadcast %18 : vector<16x1xf32> to vector<16x128xf32>
    %21 = arith.subf %19, %20 : vector<16x128xf32>
    %22 = arith.mulf %21, %21 : vector<16x128xf32>
    %cst = arith.constant -3.125000e+00 : f32
    %23 = vector.broadcast %cst : f32 to vector<16x128xf32>
    %24 = arith.mulf %22, %23 : vector<16x128xf32>
    %25 = math.exp %24 : vector<16x128xf32>
    %cst_1 = arith.constant 1.000000e+00 : f32
    %26 = vector.broadcast %cst_1 : f32 to vector<16x128xf32>
    %27 = arith.subf %26, %25 : vector<16x128xf32>
    %28 = vector.broadcast %3 : i32 to vector<1x128xi32>
    %29 = arith.cmpi slt, %12, %28 : vector<1x128xi32>
    %30 = vector.broadcast %1 : i32 to vector<16x1xi32>
    %31 = arith.cmpi slt, %11, %30 : vector<16x1xi32>
    %32 = vector.broadcast %31 : vector<16x1xi1> to vector<16x128xi1>
    %33 = vector.broadcast %29 : vector<1x128xi1> to vector<16x128xi1>
    %34 = arith.andi %32, %33 : vector<16x128xi1>
    %35 = vector.broadcast %5 : f32 to vector<16x1xf32>
    %36 = arith.mulf %18, %35 : vector<16x1xf32>
    %cst_2 = arith.constant 5.000000e-01 : f32
    %37 = vector.broadcast %cst_2 : f32 to vector<16x1xf32>
    %38 = arith.subf %36, %37 : vector<16x1xf32>
    %39 = math.ceil %38 : vector<16x1xf32>
    %cst_3 = arith.constant 1.000000e+00 : f32
    %40 = arith.subf %7, %cst_3 : f32
    %cst_4 = arith.constant 0.000000e+00 : f32
    %41 = vector.broadcast %cst_4 : f32 to vector<16x1xf32>
    %42 = arith.maximumf %41, %39 : vector<16x1xf32>
    %43 = vector.broadcast %40 : f32 to vector<16x1xf32>
    %44 = arith.minimumf %43, %42 : vector<16x1xf32>
    %45 = arith.fptosi %44 : vector<16x1xf32> to vector<16x1xi32>
    %46 = vector.broadcast %5 : f32 to vector<16x1xf32>
    %47 = arith.divf %44, %46 : vector<16x1xf32>
    %48 = arith.subf %47, %18 : vector<16x1xf32>
    %49 = arith.mulf %48, %48 : vector<16x1xf32>
    %cst_5 = arith.constant -3.125000e+00 : f32
    %50 = vector.broadcast %cst_5 : f32 to vector<16x1xf32>
    %51 = arith.mulf %49, %50 : vector<16x1xf32>
    %52 = math.exp %51 : vector<16x1xf32>
    %cst_6 = arith.constant 1.000000e+00 : f32
    %53 = vector.broadcast %cst_6 : f32 to vector<16x1xf32>
    %54 = arith.subf %53, %52 : vector<16x1xf32>
    %c6_i32 = arith.constant 6 : i32
    %55 = vector.broadcast %c6_i32 : i32 to vector<16x1xi32>
    %56 = arith.subi %45, %55 : vector<16x1xi32>
    %57 = vector.broadcast %12 : vector<1x128xi32> to vector<16x128xi32>
    %58 = vector.broadcast %56 : vector<16x1xi32> to vector<16x128xi32>
    %59 = arith.cmpi sge, %57, %58 : vector<16x128xi32>
    %c6_i32_7 = arith.constant 6 : i32
    %60 = vector.broadcast %c6_i32_7 : i32 to vector<16x1xi32>
    %61 = arith.addi %45, %60 : vector<16x1xi32>
    %62 = vector.broadcast %12 : vector<1x128xi32> to vector<16x128xi32>
    %63 = vector.broadcast %61 : vector<16x1xi32> to vector<16x128xi32>
    %64 = arith.cmpi slt, %62, %63 : vector<16x128xi32>
    %65 = arith.andi %59, %64 : vector<16x128xi1>
    %66 = vector.shape_cast %54 : vector<16x1xf32> to vector<16x1xf32>
    %67 = vector.broadcast %66 : vector<16x1xf32> to vector<16x128xf32>
    %68 = arith.select %65, %67, %27 : vector<16x128xi1>, vector<16x128xf32>
    %cst_8 = arith.constant 0.000000e+00 : f32
    %69 = vector.broadcast %cst_8 : f32 to vector<16x128xf32>
    %70 = arith.select %34, %68, %69 : vector<16x128xi1>, vector<16x128xf32>
    %c0 = arith.constant 0 : index
    %c0_9 = arith.constant 0 : index
    %c0_10 = arith.constant 0 : index
    %71 = vector.load %arg5[%c0, %c0_9, %c0_10] : memref<1x16x128xf32, #tpu.memory_space<vmem>>, vector<1x16x128xf32>
    %72 = vector.shape_cast %71 : vector<1x16x128xf32> to vector<16x128xf32>
    %73 = vector.shape_cast %70 : vector<16x128xf32> to vector<1x16x128xf32>
    tpu.vector_store %arg5[%c0, %c0_9, %c0_10], %73 {strides = array<i32>} : memref<1x16x128xf32, #tpu.memory_space<vmem>>, vector<1x16x128xf32>,
    %c0_11 = arith.constant 0 : index
    %c0_12 = arith.constant 0 : index
    %c0_13 = arith.constant 0 : index
    %74 = vector.load %arg4[%c0_11, %c0_12, %c0_13] : memref<1x16x128xf32, #tpu.memory_space<vmem>>, vector<1x16x128xf32>
    %75 = vector.shape_cast %74 : vector<1x16x128xf32> to vector<16x128xf32>
    %cst_14 = arith.constant 0.000000e+00 : f32
    %76 = vector.broadcast %cst_14 : f32 to vector<16x128xf32>
    %77 = arith.select %34, %75, %76 : vector<16x128xi1>, vector<16x128xf32>
    %78 = arith.mulf %70, %77 : vector<16x128xf32>
    %cst_15 = arith.constant dense<0.000000e+00> : vector<16xf32>
    %79 = vector.multi_reduction <add>, %78, %cst_15 [1] : vector<16x128xf32> to vector<16xf32>
    %80 = vector.shape_cast %79 : vector<16xf32> to vector<16x1xf32>
    %cst_16 = arith.constant dense<0.000000e+00> : vector<1xf32>
    %81 = vector.multi_reduction <add>, %80, %cst_16 [0] : vector<16x1xf32> to vector<1xf32>
    %82 = vector.shape_cast %81 : vector<1xf32> to vector<1x1xf32>
    %83 = vector.shape_cast %82 : vector<1x1xf32> to vector<1x1x1x1xf32>
    %c0_17 = arith.constant 0 : index
    %c0_18 = arith.constant 0 : index
    %c0_19 = arith.constant 0 : index
    %c0_20 = arith.constant 0 : index
    %84 = vector.load %arg6[%c0_17, %c0_18, %c0_19, %c0_20] : memref<1x1x1x1xf32, #tpu.memory_space<vmem>>, vector<1x1x1x1xf32>
    tpu.vector_store %arg6[%c0_17, %c0_18, %c0_19, %c0_20], %83 {strides = array<i32>} : memref<1x1x1x1xf32, #tpu.memory_space<vmem>>, vector<1x1x1x1xf32>,
    return
  }
  func.func @transform_0(%arg0: i32, %arg1: i32, %arg2: memref<2xi32, #tpu.memory_space<smem>>, %arg3: memref<2xi32, #tpu.memory_space<smem>>) -> (i32, i32, i32) {
    %c0_i32 = arith.constant 0 : i32
    %c0_i32_0 = arith.constant 0 : i32
    return %arg0, %arg1, %c0_i32 : i32, i32, i32
  }
  func.func @transform_1(%arg0: i32, %arg1: i32, %arg2: memref<2xi32, #tpu.memory_space<smem>>, %arg3: memref<2xi32, #tpu.memory_space<smem>>) -> (i32, i32, i32) {
    %c0_i32 = arith.constant 0 : i32
    %c0_i32_0 = arith.constant 0 : i32
    return %arg0, %arg1, %c0_i32 : i32, i32, i32
  }
  func.func @transform_2(%arg0: i32, %arg1: i32, %arg2: memref<2xi32, #tpu.memory_space<smem>>, %arg3: memref<2xi32, #tpu.memory_space<smem>>) -> (i32, i32, i32, i32) {
    %c0_i32 = arith.constant 0 : i32
    %c0_i32_0 = arith.constant 0 : i32
    %c0_i32_1 = arith.constant 0 : i32
    return %arg0, %arg1, %c0_i32, %c0_i32_0 : i32, i32, i32, i32
  }
}

</mosaic_0001>

<llo_original>
// kernel: tpu_custom_call.1
$region0: #{tpu_custom_call.1}
  #allocation0 [shape = 'u32[]', space=smem, size = 0x4, offset = 0x4, fixed_abs, tag = 'smem constant byte address 0x4 - core index']
  #allocation1 [shape = 'u32[144,128]{1,0:T(1,128)}', space=vmem, size = 0x12000, scoped, tag = 'internal scratch']
  #allocation2 [shape = 's32[1]{0}', space=sflag, size = 0x4, scoped, tag = 'scoped memory for tpu_custom_call.1']
  #allocation3 [shape = 'u8[512]{0}', space=smem, size = 0x200, scoped, tag = 'prefetched SMEM operand 0']
  #allocation4 [shape = 'u8[512]{0}', space=smem, size = 0x200, scoped, tag = 'prefetched SMEM operand 1']
  %s0 = inlined_call_operand.vmem [shape: s32[2], index: 0, kind: input, shape index: {}]
  %s1 = inlined_call_operand.vmem [shape: s32[2], index: 1, kind: input, shape index: {}]
  %s2 = inlined_call_operand.vmem [shape: f32[2,12,11], index: 2, kind: input, shape index: {}]
  %s3 = inlined_call_operand.vmem [shape: f32[2,12,11], index: 3, kind: output, shape index: {0}]
  %s4 = inlined_call_operand.vmem [shape: f32[2,1,1,1], index: 4, kind: output, shape index: {1}]
  %5 = xla_tuple %s3, %s4
  %s6 = sld [smem:[#allocation0]]
  $region45: #{tpu_custom_call.1} parent=0
    _
  %s8 = ssub.s32 1, %s6
  %s9 = scalar_select 0, %s8, %s6
  %s10 = sshll.u32 %s0, 4
  %s11 = int_to_ptr.vmem [resolvable:$true] %s10
  %13 = dma.vmem_to_smem %s11, 16, [#allocation3], [#allocation2]
  %s14 = sshll.u32 %s1, 4
  %s15 = int_to_ptr.vmem [resolvable:$true] %s14
  %17 = dma.vmem_to_smem %s15, 16, [#allocation4], [#allocation2]
  %18 = dma.done [#allocation2], 32
  %19 = sfence
  loop: start=0, step=1, limit=4
  $region2: #{tpu_custom_call.1} parent=0 // loop_pre_header
    _
  $region3: #{tpu_custom_call.1} parent=0 // loop_header
    %s21 = sphi 0, %s25
    %p22 = scmp.ge.s32.totalorder %s21, 4
    %s28 = sphi 0, %s40
    %s29 = sphi 0, %s36
    %s30 = sphi 0, %s28
    %s31 = sphi 0, %s29
    %s32 = sphi 0, %s30
    %s33 = sphi 0, %s31
    %s45 = sphi 0, %s47
    %s48 = sphi 0, %s45
    %s49 = sphi 0, %s48
    %s65 = sphi 0, %s49
    %s73 = sphi 0, %s75
    %s76 = sphi 0, %s73
    %s77 = sphi 0, %s76
    %s93 = sphi 0, %s77
    %s101 = sphi 0, %s103
    %s104 = sphi 0, %s101
    %s105 = sphi 0, %s104
    %s121 = sphi 0, %s105
  $region4: #{tpu_custom_call.1} parent=0 // loop_header_branch
    %24 = sbr.rel (%p22) target = $region8
  $region5: #{tpu_custom_call.1} parent=0 // loop_body
    %s26 = ssub.s32 %s21, 1
    %s27 = ssub.s32 %s21, 2
    %s34 = sadd.s32 1, %s29
    %p35 = scmp.ge.s32.totalorder %s34, 1
    %s36 = scalar_select %p35, 0, %s34
    %s37 = sadd.s32 1, %s28
    %s38 = scalar_select %p35, %s37, %s28
    %p39 = scmp.ge.s32.totalorder %s38, 2
    %s40 = scalar_select %p39, 0, %s38
    %s41 = ssub.s32 %s28, %s40
    %s42 = ssub.s32 %s29, %s36
    %s43 = sor.u32 %s41, %s42
    %p44 = scmp.eq.s32.totalorder %s43, 0
    %s46 = sadd.s32 %s45, 1
    %s47 = scalar_select %p44, %s45, %s46
    %p50 = pneg %p44
    %p51 = scmp.eq.s32.totalorder %s21, 1
    %p52 = por %p50, %p51
    %p53 = scmp.ne.s32.totalorder %s45, %s48
    %p54 = scmp.eq.s32.totalorder %s21, 0
    %p55 = por %p53, %p54
    %p56 = scmp.ne.s32.totalorder %s45, %s48
    %p57 = scmp.eq.s32.totalorder %s26, 1
    %p58 = por %p56, %p57
    %p59 = scmp.ne.s32.totalorder %s48, %s49
    %p60 = scmp.eq.s32.totalorder %s26, 0
    %p61 = por %p59, %p60
    %p62 = scmp.ne.s32.totalorder %s48, %s49
    %p63 = scmp.eq.s32.totalorder %s27, 1
    %p64 = por %p62, %p63
    %p66 = scmp.ne.s32.totalorder %s49, %s65
    %p67 = scmp.eq.s32.totalorder %s27, 0
    %p68 = por %p66, %p67
    %s69 = ssub.s32 %s28, %s40
    %s70 = ssub.s32 %s29, %s36
    %s71 = sor.u32 %s69, %s70
    %p72 = scmp.eq.s32.totalorder %s71, 0
    %s74 = sadd.s32 %s73, 1
    %s75 = scalar_select %p72, %s73, %s74
    %p78 = pneg %p72
    %p79 = scmp.eq.s32.totalorder %s21, 1
    %p80 = por %p78, %p79
    %p81 = scmp.ne.s32.totalorder %s73, %s76
    %p82 = scmp.eq.s32.totalorder %s21, 0
    %p83 = por %p81, %p82
    %p84 = scmp.ne.s32.totalorder %s73, %s76
    %p85 = scmp.eq.s32.totalorder %s26, 1
    %p86 = por %p84, %p85
    %p87 = scmp.ne.s32.totalorder %s76, %s77
    %p88 = scmp.eq.s32.totalorder %s26, 0
    %p89 = por %p87, %p88
    %p90 = scmp.ne.s32.totalorder %s76, %s77
    %p91 = scmp.eq.s32.totalorder %s27, 1
    %p92 = por %p90, %p91
    %p94 = scmp.ne.s32.totalorder %s77, %s93
    %p95 = scmp.eq.s32.totalorder %s27, 0
    %p96 = por %p94, %p95
    %s97 = ssub.s32 %s28, %s40
    %s98 = ssub.s32 %s29, %s36
    %s99 = sor.u32 %s97, %s98
    %p100 = scmp.eq.s32.totalorder %s99, 0
    %s102 = sadd.s32 %s101, 1
    %s103 = scalar_select %p100, %s101, %s102
    %p106 = pneg %p100
    %p107 = scmp.eq.s32.totalorder %s21, 1
    %p108 = por %p106, %p107
    %p109 = scmp.ne.s32.totalorder %s101, %s104
    %p110 = scmp.eq.s32.totalorder %s21, 0
    %p111 = por %p109, %p110
    %p112 = scmp.ne.s32.totalorder %s101, %s104
    %p113 = scmp.eq.s32.totalorder %s26, 1
    %p114 = por %p112, %p113
    %p115 = scmp.ne.s32.totalorder %s104, %s105
    %p116 = scmp.eq.s32.totalorder %s26, 0
    %p117 = por %p115, %p116
    %p118 = scmp.ne.s32.totalorder %s104, %s105
    %p119 = scmp.eq.s32.totalorder %s27, 1
    %p120 = por %p118, %p119
    %p122 = scmp.ne.s32.totalorder %s105, %s121
    %p123 = scmp.eq.s32.totalorder %s27, 0
    %p124 = por %p122, %p123
    %p125 = scmp.le.s32.totalorder 1, %s21
    %p126 = scmp.lt.s32.totalorder %s21, 3
    %p127 = pnand %p125, %p126
    %p128 = pneg %p127
    // Predicated region
    $region9: #{tpu_custom_call.1} parent=5 // pred_check
      _
    $region10: #{tpu_custom_call.1} parent=5 // pred_check_branch
      %130 = sbr.rel (%p127) target = $region12
    $region11: #{tpu_custom_call.1} parent=5 // pred_region
      %s131 = ssub.s32 %s21, 1
    $region12: #{tpu_custom_call.1} parent=5 // pred_fallthru
      _
    %p132 = scmp.lt.s32.totalorder %s21, 2
    // Predicated region
    $region13: #{tpu_custom_call.1} parent=5 // pred_check
      %p133 = pneg %p132
    $region14: #{tpu_custom_call.1} parent=5 // pred_check_branch
      %135 = sbr.rel (%p133) target = $region16
    $region15: #{tpu_custom_call.1} parent=5 // pred_region
      // Predicated region
      $region17: #{tpu_custom_call.1} parent=15 // pred_check
        %p136 = pneg %p55
      $region18: #{tpu_custom_call.1} parent=15 // pred_check_branch
        %138 = sbr.rel (%p136) target = $region20
      $region19: #{tpu_custom_call.1} parent=15 // pred_region
        %s139 = smul.u32 2, %s29
        %p140 = scmp.lt.s32.totalorder %s28, 1
        %s141 = scalar_select %p140, %s28, 1
        %p142 = scmp.lt.s32.totalorder %s139, 1
        %s143 = scalar_select %p142, %s139, 1
        %s144 = smul.addr %s141, 2
        %s145 = sadd.s32 %s143, %s144
        %s146 = smul.addr %s145, 8
        %s147 = scalar_lea.vmem %s2, %s146
        %s148 = smul.u32 2, %s29
      $region20: #{tpu_custom_call.1} parent=15 // pred_fallthru
        _
    $region16: #{tpu_custom_call.1} parent=5 // pred_fallthru
      _
    %p149 = scmp.le.s32.totalorder 1, %s21
    %p150 = scmp.lt.s32.totalorder %s21, 3
    %p151 = pnand %p149, %p150
    %p152 = pneg %p151
    // Predicated region
    $region21: #{tpu_custom_call.1} parent=5 // pred_check
      _
    $region22: #{tpu_custom_call.1} parent=5 // pred_check_branch
      %154 = sbr.rel (%p151) target = $region24
    $region23: #{tpu_custom_call.1} parent=5 // pred_region
      %s155 = ssub.s32 %s21, 1
      %s156 = smul.u32 2, %s31
      %p157 = scmp.lt.s32.totalorder %s30, 1
      %s158 = scalar_select %p157, %s30, 1
      %p159 = scmp.lt.s32.totalorder %s156, 1
      %s160 = scalar_select %p159, %s156, 1
      %s161 = smul.addr %s158, 2
      %s162 = sadd.s32 %s160, %s161
      %s163 = smul.addr %s162, 8
      %s164 = scalar_lea.vmem %s2, %s163
      %p165 = pneg %p61
      %p166 = pneg %p58
      %p167 = pneg %p89
      %p168 = pneg %p86
      %s169 = smul.u32 2, %s31
      %p170 = scmp.lt.s32.totalorder %s30, 1
      %s171 = scalar_select %p170, %s30, 1
      %p172 = scmp.lt.s32.totalorder %s169, 1
      %s173 = scalar_select %p172, %s169, 1
      %s174 = smul.addr %s171, 2
      %s175 = sadd.s32 %s173, %s174
      %s176 = smul.addr %s175, 8
      %s177 = scalar_lea.vmem %s3, %s176
      %p178 = pneg %p117
      %p179 = pneg %p114
      %p180 = scmp.lt.s32.totalorder %s30, 1
      %s181 = scalar_select %p180, %s30, 1
      %p182 = scmp.lt.s32.totalorder %s31, 0
      %s183 = scalar_select %p182, %s31, 0
      %s184 = sadd.s32 %s183, %s181
      %s185 = scalar_lea.vmem %s4, %s184
      %s186 = smul.u32 2, %s31
      %p187 = scmp.lt.s32.totalorder %s30, 1
      %s188 = scalar_select %p187, %s30, 1
      %p189 = scmp.lt.s32.totalorder %s186, 1
      %s190 = scalar_select %p189, %s186, 1
      %s191 = smul.addr %s188, 2
      %s192 = sadd.s32 %s190, %s191
      %s193 = smul.addr %s192, 8
      %s194 = scalar_lea.vmem %s2, %s193
      %s195 = smul.u32 2, %s31
      %s196 = smul.u32 2, %s31
      %p197 = scmp.lt.s32.totalorder %s30, 1
      %s198 = scalar_select %p197, %s30, 1
      %p199 = scmp.lt.s32.totalorder %s196, 1
      %s200 = scalar_select %p199, %s196, 1
      %s201 = smul.addr %s198, 2
      %s202 = sadd.s32 %s200, %s201
      %s203 = smul.addr %s202, 8
      %s204 = scalar_lea.vmem %s3, %s203
      %s205 = smul.u32 2, %s31
      %p206 = scmp.lt.s32.totalorder %s30, 1
      %s207 = scalar_select %p206, %s30, 1
      %p208 = scmp.lt.s32.totalorder %s31, 0
      %s209 = scalar_select %p208, %s31, 0
      %s210 = sadd.s32 %s209, %s207
      %s211 = scalar_lea.vmem %s4, %s210
      %s212 = sld [smem:[#allocation3 + %s30]]
      %s213 = sld [smem:[#allocation4 + %s30]]
      %p214 = scmp.gt.s32.totalorder %s212, 1
      %s215 = scalar_select %p214, %s212, 1
      %s216 = scvt.s32.f32 %s215
      %p217 = scmp.gt.s32.totalorder %s213, 1
      %s218 = scalar_select %p217, %s213, 1
      %s219 = scvt.s32.f32 %s218
      %s220 = smul.u32 %s31, 16
      %v221 = vlaneseq
      %v222 = vshrl.u32 %v221, 7
      %v223 = vadd.s32 %v222, 8
      %v224 = vstv %s220
      %v225 = vadd.s32 %v222, %v224
      %v226 = vadd.s32 %v223, %v224
      %v227 = vlaneseq
      %v228 = vand.u32 %v227, 127
      %v229 = vcvt.s32.f32 %v228
      %v230 = vstv %s216
      %v231 = vrcp.pop %v230
      %v232 = vmul.f32 %v229, %v231
      %v233 = vcvt.s32.f32 %v225
      %v234 = vcvt.s32.f32 %v226
      %v235 = vstv %s219
      %v236 = vrcp.pop %v235
      %v237 = vmul.f32 %v233, %v236
      %v238 = vmul.f32 %v234, %v236
      %v239 = vsub.f32 %v232, %v237
      %v240 = vsub.f32 %v232, %v238
      %v241 = vmul.f32 %v239, %v239
      %v242 = vmul.f32 %v240, %v240
      %v243 = vmul.f32 %v241, -3.125
      %v244 = vmul.f32 %v242, -3.125
      %v245 = vmul.f32 %v243, 1.442695
      %v246 = vpow.pop %v245
      %v247 = vmul.f32 %v244, 1.442695
      %v248 = vpow.pop %v247
      %v249 = vsub.f32 1.0, %v246
      %v250 = vsub.f32 1.0, %v248
      %v251 = vstv %s213
      %vm252 = vcmp.lt.s32.totalorder %v228, %v251
      %v253 = vstv %s212
      %vm254 = vcmp.lt.s32.totalorder %v225, %v253
      %vm255 = vcmp.lt.s32.totalorder %v226, %v253
      %v256 = vsel %vm254, 1, 0
      %v257 = vsel %vm255, 1, 0
      %vm258 = vcmp.eq.s32.totalorder %v256, 1
      %vm259 = vcmp.eq.s32.totalorder %v257, 1
      %v260 = vsel %vm252, 1, 0
      %vm261 = vcmp.eq.s32.totalorder %v260, 1
      %vm262 = vmand %vm258, %vm261
      %vm263 = vmand %vm259, %vm261
      %v264 = vmul.f32 %v237, %v230
      %v265 = vmul.f32 %v238, %v230
      %v266 = vsub.f32 %v264, 0.5
      %v267 = vsub.f32 %v265, 0.5
      %v268 = vceil.f32 %v266
      %v269 = vceil.f32 %v267
      %s270 = ssub.f32 %s219, 1.0
      %v271 = vmax.f32 %v268, 0.0
      %v272 = vmax.f32 %v269, 0.0
      %v273 = vstv %s270
      %v274 = vmin.f32 %v273, %v271
      %v275 = vmin.f32 %v273, %v272
      %v276 = vcvt.f32.s32.to.zero.pseudo %v274
      %v277 = vcvt.f32.s32.to.zero.pseudo %v275
      %v278 = vmul.f32 %v274, %v231
      %v279 = vmul.f32 %v275, %v231
      %v280 = vsub.f32 %v278, %v237
      %v281 = vsub.f32 %v279, %v238
      %v282 = vmul.f32 %v280, %v280
      %v283 = vmul.f32 %v281, %v281
      %v284 = vmul.f32 %v282, -3.125
      %v285 = vmul.f32 %v283, -3.125
      %v286 = vmul.f32 %v284, 1.442695
      %v287 = vpow.pop %v286
      %v288 = vmul.f32 %v285, 1.442695
      %v289 = vpow.pop %v288
      %v290 = vsub.f32 1.0, %v287
      %v291 = vsub.f32 1.0, %v289
      %v292 = vsub.s32 %v276, 6
      %v293 = vsub.s32 %v277, 6
      %vm294 = vcmp.ge.s32.totalorder %v228, %v292
      %vm295 = vcmp.ge.s32.totalorder %v228, %v293
      %v296 = vadd.s32 %v276, 6
      %v297 = vadd.s32 %v277, 6
      %vm298 = vcmp.lt.s32.totalorder %v228, %v296
      %vm299 = vcmp.lt.s32.totalorder %v228, %v297
      %vm300 = vmand %vm294, %vm298
      %vm301 = vmand %vm295, %vm299
      %v302 = vsel %vm300, %v290, %v249
      %v303 = vsel %vm301, %v291, %v250
      %v304 = vsel %vm262, %v302, 0.0
      %v305 = vsel %vm263, %v303, 0.0
      %306 = vst [vmem:[%s204] sm:$0xff] %v304
      %307 = vst [vmem:[%s204 + $0x8] sm:$0xff] %v305
      %v308 = vld [vmem:[%s194] sm:$0xff]
      %v309 = vld [vmem:[%s194 + $0x8] sm:$0xff]
      %v310 = vsel %vm262, %v308, 0.0
      %v311 = vsel %vm263, %v309, 0.0
      %v312 = vmul.f32 %v304, %v310
      %v313 = vmul.f32 %v305, %v311
      %314 = vadd.xlane.f32.xlu0 %v312
      %v315 = vpop.xlane.xlu0 %314
      %316 = vadd.xlane.f32.xlu0 %v313
      %v317 = vpop.xlane.xlu0 %316
      %v318 = vadd.f32 %v315, %v317
      %v319 = vrot.slane %v318, 4
      %v320 = vadd.f32 %v318, %v319
      %v321 = vrot.slane %v320, 2
      %v322 = vadd.f32 %v320, %v321
      %v323 = vrot.slane %v322, 1
      %v324 = vadd.f32 %v322, %v323
      %vm325 = vcmask 0
      %326 = vst.msk [vmem:[%s211] sm:$0x1] %vm325, %v324
      %s327 = smul.u32 2, %s31
      %p328 = scmp.lt.s32.totalorder %s30, 1
      %s329 = scalar_select %p328, %s30, 1
      %p330 = scmp.lt.s32.totalorder %s327, 1
      %s331 = scalar_select %p330, %s327, 1
      %s332 = smul.addr %s329, 2
      %s333 = sadd.s32 %s331, %s332
      %s334 = smul.addr %s333, 8
      %s335 = scalar_lea.vmem %s3, %s334
      %p336 = scmp.lt.s32.totalorder %s30, 1
      %s337 = scalar_select %p336, %s30, 1
      %p338 = scmp.lt.s32.totalorder %s31, 0
      %s339 = scalar_select %p338, %s31, 0
      %s340 = sadd.s32 %s339, %s337
      %s341 = scalar_lea.vmem %s4, %s340
      // Predicated region
      $region25: #{tpu_custom_call.1} parent=23 // pred_check
        %p342 = pneg %p86
      $region26: #{tpu_custom_call.1} parent=23 // pred_check_branch
        %344 = sbr.rel (%p342) target = $region28
      $region27: #{tpu_custom_call.1} parent=23 // pred_region
        %s345 = smul.u32 2, %s31
      $region28: #{tpu_custom_call.1} parent=23 // pred_fallthru
        _
      // Predicated region
      $region29: #{tpu_custom_call.1} parent=23 // pred_check
        %p346 = pneg %p114
      $region30: #{tpu_custom_call.1} parent=23 // pred_check_branch
        %348 = sbr.rel (%p346) target = $region32
      $region31: #{tpu_custom_call.1} parent=23 // pred_region
        _
      $region32: #{tpu_custom_call.1} parent=23 // pred_fallthru
        _
    $region24: #{tpu_custom_call.1} parent=5 // pred_fallthru
      _
    %p349 = scmp.le.s32.totalorder 2, %s21
    // Predicated region
    $region33: #{tpu_custom_call.1} parent=5 // pred_check
      %p350 = pneg %p349
    $region34: #{tpu_custom_call.1} parent=5 // pred_check_branch
      %352 = sbr.rel (%p350) target = $region36
    $region35: #{tpu_custom_call.1} parent=5 // pred_region
      %s353 = ssub.s32 %s21, 2
      // Predicated region
      $region37: #{tpu_custom_call.1} parent=35 // pred_check
        %p354 = pneg %p92
      $region38: #{tpu_custom_call.1} parent=35 // pred_check_branch
        %356 = sbr.rel (%p354) target = $region40
      $region39: #{tpu_custom_call.1} parent=35 // pred_region
        %s357 = smul.u32 2, %s33
        %p358 = scmp.lt.s32.totalorder %s32, 1
        %s359 = scalar_select %p358, %s32, 1
        %p360 = scmp.lt.s32.totalorder %s357, 1
        %s361 = scalar_select %p360, %s357, 1
        %s362 = smul.addr %s359, 2
        %s363 = sadd.s32 %s361, %s362
        %s364 = smul.addr %s363, 8
        %s365 = scalar_lea.vmem %s3, %s364
      $region40: #{tpu_custom_call.1} parent=35 // pred_fallthru
        _
      // Predicated region
      $region41: #{tpu_custom_call.1} parent=35 // pred_check
        %p366 = pneg %p120
      $region42: #{tpu_custom_call.1} parent=35 // pred_check_branch
        %368 = sbr.rel (%p366) target = $region44
      $region43: #{tpu_custom_call.1} parent=35 // pred_region
        %p369 = scmp.lt.s32.totalorder %s32, 1
        %s370 = scalar_select %p369, %s32, 1
        %p371 = scmp.lt.s32.totalorder %s33, 0
        %s372 = scalar_select %p371, %s33, 0
        %s373 = sadd.s32 %s372, %s370
        %s374 = scalar_lea.vmem %s4, %s373
      $region44: #{tpu_custom_call.1} parent=35 // pred_fallthru
        _
    $region36: #{tpu_custom_call.1} parent=5 // pred_fallthru
      _
  $region6: #{tpu_custom_call.1} parent=0 // loop_footer
    %s25 = sadd.s32 1, %s21
  $region7: #{tpu_custom_call.1} parent=0 // loop_footer_branch
    %20 = sbr.rel target = $region3
  $region8: #{tpu_custom_call.1} parent=0 // loop_exit
    _

</llo_original>
